<compile_context>
chip_gen: v7x
topology: tpu7x:2x2x1
jax: 0.10.0
libtpu: 0.0.40
codegen_flags: <defaults>
</compile_context>

<pallas_src>
import jax
import jax.numpy as jnp
from jax import lax
from jax.experimental import pallas as pl
from jax.experimental.pallas import tpu as pltpu


def _round_up(x, m):
    return ((x + m - 1) // m) * m


def _vmem_capacity_bytes():
    try:
        # Per-TensorCore VMEM (v5e/v6e: 128 MiB, v7x: 64 MiB).
        return int(pltpu.get_tpu_info().vmem_capacity_bytes)
    except Exception:
        return 64 * 1024 * 1024  # conservative default (v7x per-core VMEM)


# ---------------------------------------------------------------------------
# Kernel 1: table resident in VMEM, gather via one-hot MXU matmul.
# ---------------------------------------------------------------------------
def _onehot_gather_kernel(ids_ref, table_ref, out_ref):
    # ids_ref:   (bt, 1)        int32, VMEM
    # table_ref: (e_pad, d_pad) table, VMEM (constant block index -> resident)
    # out_ref:   (bt, d_pad)
    bt = out_ref.shape[0]
    e = table_ref.shape[0]
    row_iota = lax.broadcasted_iota(jnp.int32, (bt, e), 1)
    one_hot = (ids_ref[...] == row_iota).astype(table_ref.dtype)
    out_ref[...] = jnp.dot(
        one_hot, table_ref[...], preferred_element_type=jnp.float32
    ).astype(out_ref.dtype)


# ---------------------------------------------------------------------------
# Kernel 2: table in HBM, per-row gather DMAs directly into the out block.
# ---------------------------------------------------------------------------
def _hbm_gather_kernel(ids_ref, table_ref, out_ref, sem):
    # ids_ref:   (n_pad,) int32 in SMEM (scalar prefetch)
    # table_ref: (num_embeddings, d_pad) in HBM (memory_space=pl.ANY)
    # out_ref:   (bt, d_pad) pipelined VMEM output block
    bt = out_ref.shape[0]
    base = pl.program_id(0) * bt
    group = 8  # bt is always a multiple of 8 (f32 sublane group)

    def issue_group(g, carry):
        j0 = g * group
        # Static 8-wide unroll: interleaves scalar id reads with DMA
        # descriptor pushes (issue-bound otherwise — single vector-misc slot).
        for u in range(group):
            j = j0 + u
            row = ids_ref[base + j]
            pltpu.make_async_copy(
                table_ref.at[pl.ds(row, 1), :],
                out_ref.at[pl.ds(j, 1), :],
                sem,
            ).start()
        return carry

    lax.fori_loop(0, bt // group, issue_group, None)

    # Single aggregated drain: the DMA semaphore counts bytes, so one wait
    # sized for the full (bt, d_pad) block matches the bt per-row signals.
    pltpu.make_async_copy(out_ref, out_ref, sem).wait()


# ---------------------------------------------------------------------------
# Wrapper: DistEmbedding.forward equivalent (table[ids]).
# ---------------------------------------------------------------------------
def dist_embedding_lookup(ids, table, *, block_ids=None, force_hbm=False,
                          max_onehot_rows=4096):
    orig_shape = ids.shape
    num_embeddings, embedding_dim = table.shape
    itemsize = jnp.dtype(table.dtype).itemsize
    sublane = 8 * max(1, 4 // itemsize)  # 8 (f32), 16 (bf16), 32 (int8)

    # Lane-pad the embedding dim so output blocks / row DMAs are lane-dense.
    d_pad = _round_up(embedding_dim, 128)
    if d_pad != embedding_dim:
        table = jnp.pad(table, ((0, 0), (0, d_pad - embedding_dim)))

    # Clamp ids (PyTorch raises on OOB; clamping avoids OOB HBM reads).
    ids_flat = jnp.clip(ids.reshape(-1).astype(jnp.int32), 0, num_embeddings - 1)
    n = int(ids_flat.shape[0])

    vmem_cap = _vmem_capacity_bytes()
    budget = max(vmem_cap - (8 << 20), 16 << 20)

    if block_ids is None:
        block_ids = 512  # multiple of 256 (v6e/v7x MXU) and 128 (v5e MXU)

    # Cap bt by embedding_dim so the double-buffered out blocks (+ slack) fit
    # scoped VMEM (tightest on v7x's 64 MiB).
    bt_cap = max(sublane, ((budget // 3) // (d_pad * itemsize)) // sublane * sublane)
    bt = min(int(block_ids), _round_up(max(n, 1), sublane), bt_cap)
    bt = _round_up(bt, sublane)

    n_pad = _round_up(max(n, 1), bt)
    num_chunks = n_pad // bt
    # v7x megacore ("parallel" grid axis): keep chunk count even so both
    # TensorCores get work (the extra chunk just re-gathers row 0, sliced off).
    if num_chunks > 1 and num_chunks % 2 == 1:
        num_chunks += 1
        n_pad = num_chunks * bt
    if n_pad != n:
        ids_flat = jnp.pad(ids_flat, (0, n_pad - n))

    # Resident (one-hot MXU) feasibility — accounts for the default
    # double-buffering of the constant-index table block and of the out block,
    # plus the (bt, e_pad) one-hot intermediate.
    e_pad = _round_up(num_embeddings, 256)
    resident_vmem = (2 * e_pad * d_pad * itemsize      # table (double-buffered)
                     + 2 * bt * d_pad * itemsize       # out   (double-buffered)
                     + bt * e_pad * itemsize           # one-hot intermediate
                     + 2 * bt * 4                      # ids blocks
                     + (4 << 20))                      # slack
    use_onehot = ((not force_hbm)
                  and num_embeddings <= max_onehot_rows
                  and resident_vmem <= budget)

    out_shape = jax.ShapeDtypeStruct((n_pad, d_pad), table.dtype)

    if use_onehot:
        table_r = table
        if e_pad != num_embeddings:
            table_r = jnp.pad(table, ((0, e_pad - num_embeddings), (0, 0)))
        ids_col = ids_flat.reshape(n_pad, 1)

        cost = pl.CostEstimate(
            flops=2 * n_pad * e_pad * d_pad,
            transcendentals=0,
            bytes_accessed=(e_pad * d_pad * itemsize     # table read once
                            + n_pad * 4                  # ids
                            + n_pad * d_pad * itemsize)  # output
        )
        vmem_limit = int(min(vmem_cap, max(resident_vmem + (8 << 20), 32 << 20)))

        out = pl.pallas_call(
            _onehot_gather_kernel,
            out_shape=out_shape,
            grid=(num_chunks,),
            in_specs=[
                pl.BlockSpec((bt, 1), lambda i: (i, 0)),
                # Full-extent table block, constant index -> resident in VMEM.
                pl.BlockSpec((e_pad, d_pad), lambda i: (0, 0)),
            ],
            out_specs=pl.BlockSpec((bt, d_pad), lambda i: (i, 0)),
            compiler_params=pltpu.CompilerParams(
                dimension_semantics=("parallel",),
                vmem_limit_bytes=vmem_limit,
            ),
            cost_estimate=cost,
        )(ids_col, table_r)
    else:
        hbm_vmem = 2 * bt * d_pad * itemsize + (4 << 20)
        vmem_limit = int(min(vmem_cap, max(hbm_vmem + (8 << 20), 32 << 20)))
        cost = pl.CostEstimate(
            flops=0,
            transcendentals=0,
            bytes_accessed=n_pad * 4 + 2 * n_pad * d_pad * itemsize,
        )
        grid_spec = pltpu.PrefetchScalarGridSpec(
            num_scalar_prefetch=1,
            grid=(num_chunks,),
            in_specs=[pl.BlockSpec(memory_space=pl.ANY)],  # table stays in HBM
            out_specs=pl.BlockSpec((bt, d_pad), lambda i, ids_ref: (i, 0)),
            scratch_shapes=[pltpu.SemaphoreType.DMA(())],
        )
        out = pl.pallas_call(
            _hbm_gather_kernel,
            out_shape=out_shape,
            grid_spec=grid_spec,
            compiler_params=pltpu.CompilerParams(
                dimension_semantics=("parallel",),
                vmem_limit_bytes=vmem_limit,
            ),
            cost_estimate=cost,
        )(ids_flat, table)

    out = out[:n, :embedding_dim]
    return out.reshape(orig_shape + (embedding_dim,))


def make_embedding_table(num_embeddings, embedding_dim, key):
    # DistEmbedding defaults to zero init when init_func is None; use a
    # deterministic normal init so the gather is observable.
    return jax.random.normal(key, (num_embeddings, embedding_dim),
                             dtype=jnp.float32)


if __name__ == "__main__":
    key = jax.random.PRNGKey(0)
    k_table, k_ids, k_ids2, k_t2 = jax.random.split(key, 4)

    num_embeddings = 64
    embedding_dim = 128  # lane-aligned
    batch = 8

    table = make_embedding_table(num_embeddings, embedding_dim, k_table)
    ids = jax.random.randint(k_ids, (batch,), 0, num_embeddings, dtype=jnp.int32)
    ref = table[ids]

    # 1) Resident one-hot MXU fast path (demo size always selects it).
    embs = jax.block_until_ready(dist_embedding_lookup(ids, table))
    assert embs.shape == (batch, embedding_dim)
    assert embs.dtype == jnp.float32
    assert bool(jnp.allclose(embs, ref)), "resident-path mismatch vs reference"

    # 2) Large-table HBM DMA-gather path (forced, to exercise it).
    embs_hbm = jax.block_until_ready(
        dist_embedding_lookup(ids, table, force_hbm=True))
    assert bool(jnp.allclose(embs_hbm, ref)), "hbm-path mismatch vs reference"

    # 3) Multi-chunk + ragged tail + 2-D id batch (chunk offsets / padding /
    #    even-chunk rounding).
    ids_many = jax.random.randint(k_ids2, (2, 10), 0, num_embeddings,
                                  dtype=jnp.int32)
    ref_many = table[ids_many]
    out_many = jax.block_until_ready(
        dist_embedding_lookup(ids_many, table, block_ids=8))
    assert out_many.shape == (2, 10, embedding_dim)
    assert bool(jnp.allclose(out_many, ref_many)), "multi-chunk resident mismatch"
    out_many_hbm = jax.block_until_ready(
        dist_embedding_lookup(ids_many, table, block_ids=8, force_hbm=True))
    assert bool(jnp.allclose(out_many_hbm, ref_many)), "multi-chunk hbm mismatch"

    # 4) Non-lane-aligned embedding_dim (exercises the D->128 padding + slice).
    dim_odd = 72
    table_odd = make_embedding_table(num_embeddings, dim_odd, k_t2)
    ref_odd = table_odd[ids]
    out_odd = jax.block_until_ready(dist_embedding_lookup(ids, table_odd))
    assert out_odd.shape == (batch, dim_odd)
    assert bool(jnp.allclose(out_odd, ref_odd)), "padded-D resident mismatch"
    out_odd_hbm = jax.block_until_ready(
        dist_embedding_lookup(ids, table_odd, force_hbm=True))
    assert bool(jnp.allclose(out_odd_hbm, ref_odd)), "padded-D hbm mismatch"

    print("KERNEL_OK")
</pallas_src>

<mosaic_0001>
module attributes {stable_mosaic.version = 11 : i64} {
  func.func @_onehot_gather_kernel(%arg0: i32, %arg1: memref<8x1xi32, #tpu.memory_space<vmem>>, %arg2: memref<256x128xf32, #tpu.memory_space<vmem>>, %arg3: memref<8x128xf32, #tpu.memory_space<vmem>>) attributes {dimension_semantics = [#tpu.dimension_semantics<parallel>], iteration_bounds = array<i64: 1>, scalar_prefetch = 0 : i64, scratch_operands = 0 : i64, tpu.core_type = #tpu.core_type<tc>, window_params = [{transform_indices = @transform_0, window_bounds = array<i64: 8, 1>}, {pipeline_mode = #tpu.pipeline_mode<synchronous>, transform_indices = @transform_1, window_bounds = array<i64: 256, 128>}, {transform_indices = @transform_2, window_bounds = array<i64: 8, 128>}]} {
    %0 = tpu.iota {dimensions = array<i32: 1>} : vector<8x256xi32>
    %c0 = arith.constant 0 : index
    %c0_0 = arith.constant 0 : index
    %1 = vector.load %arg1[%c0, %c0_0] : memref<8x1xi32, #tpu.memory_space<vmem>>, vector<8x1xi32>
    %2 = vector.broadcast %1 : vector<8x1xi32> to vector<8x256xi32>
    %3 = arith.cmpi eq, %2, %0 : vector<8x256xi32>
    %4 = arith.extui %3 : vector<8x256xi1> to vector<8x256xi32>
    %5 = arith.sitofp %4 : vector<8x256xi32> to vector<8x256xf32>
    %c0_1 = arith.constant 0 : index
    %c0_2 = arith.constant 0 : index
    %6 = vector.load %arg2[%c0_1, %c0_2] : memref<256x128xf32, #tpu.memory_space<vmem>>, vector<256x128xf32>
    %cst = arith.constant dense<0.000000e+00> : vector<8x128xf32>
    %7 = tpu.matmul %5, %6, %cst {dimension_numbers = #tpu.dot_dimension_numbers<[1], [0], [0], [1], [0, 0, 1, 1], [], []>} : vector<8x256xf32>, vector<256x128xf32>, vector<8x128xf32> -> vector<8x128xf32>
    %c0_3 = arith.constant 0 : index
    %c0_4 = arith.constant 0 : index
    %8 = vector.load %arg3[%c0_3, %c0_4] : memref<8x128xf32, #tpu.memory_space<vmem>>, vector<8x128xf32>
    tpu.vector_store %arg3[%c0_3, %c0_4], %7 {strides = array<i32>} : memref<8x128xf32, #tpu.memory_space<vmem>>, vector<8x128xf32>,
    return
  }
  func.func @transform_0(%arg0: i32) -> (i32, i32) {
    %c0_i32 = arith.constant 0 : i32
    %c0_i32_0 = arith.constant 0 : i32
    return %arg0, %c0_i32 : i32, i32
  }
  func.func @transform_1(%arg0: i32) -> (i32, i32) {
    %c0_i32 = arith.constant 0 : i32
    %c0_i32_0 = arith.constant 0 : i32
    %c0_i32_1 = arith.constant 0 : i32
    return %c0_i32, %c0_i32_0 : i32, i32
  }
  func.func @transform_2(%arg0: i32) -> (i32, i32) {
    %c0_i32 = arith.constant 0 : i32
    %c0_i32_0 = arith.constant 0 : i32
    return %arg0, %c0_i32 : i32, i32
  }
}

</mosaic_0001>

<llo_original>
// kernel: tpu_custom_call.1
$region0: #{tpu_custom_call.1}
  #allocation0 [shape = 'u32[]', space=smem, size = 0x4, offset = 0x4, fixed_abs, tag = 'smem constant byte address 0x4 - core index']
  #allocation1 [shape = 'u32[144,128]{1,0:T(1,128)}', space=vmem, size = 0x12000, scoped, tag = 'internal scratch']
  %s0 = inlined_call_operand.vmem [shape: s32[8,1], index: 0, kind: input, shape index: {}]
  %s1 = inlined_call_operand.hbm [shape: f32[256,128], index: 1, kind: input, shape index: {}]
  %s2 = inlined_call_operand.hbm [shape: f32[8,128], index: 2, kind: output, shape index: {}]
  %s3 = sld [smem:[#allocation0]]
  $region22: #{tpu_custom_call.1} parent=0
    _
  %s5 = ssub.s32 1, %s3
  %s6 = scalar_select 0, %s5, %s3
  $region1: #{tpu_custom_call.1} parent=0
    #allocation2 [shape = 'u8[131072]{0}', space=vmem, size = 0x20000, scoped, tag = 'input window, operand 1, single buffered']
    #allocation3 [shape = 's32[1]{0}', space=sflag, size = 0x4, scoped, tag = 'scoped memory for tpu_custom_call.1']
    #allocation4 [shape = 's32[1]{0}', space=sflag, size = 0x4, scoped, tag = 'scoped memory for tpu_custom_call.1']
    #allocation5 [shape = 'u8[4096]{0}', space=vmem, size = 0x1000, scoped, tag = 'output window, operand 0, single buffered']
    %7 = vsyncpa [#allocation3], 0
    %8 = vsyncpa [#allocation4], 0
    // Predicated region
    $region2: #{tpu_custom_call.1} parent=1 // pred_check
      _
    $region3: #{tpu_custom_call.1} parent=1 // pred_check_branch
      %10 = sbr.rel (0) target = $region5
    $region4: #{tpu_custom_call.1} parent=1 // pred_region
      _
    $region5: #{tpu_custom_call.1} parent=1 // pred_fallthru
      _
    // Predicated region
    $region6: #{tpu_custom_call.1} parent=1 // pred_check
      _
    $region7: #{tpu_custom_call.1} parent=1 // pred_check_branch
      %12 = sbr.rel (0) target = $region9
    $region8: #{tpu_custom_call.1} parent=1 // pred_region
      %s14 = ssub.s32 4096, 4096
      %15 = vsyncadd [#allocation3], %s14
      %s16 = sshll.u32 [#allocation2], 4
      %s17 = int_to_ptr.vmem [resolvable:$true] %s16
      %22 = dma.hbm_to_vmem [thread:$0]  %s1, 4096, %s17, [#allocation3], 128, 128, 8
    $region9: #{tpu_custom_call.1} parent=1 // pred_fallthru
      _
    // Predicated region
    $region10: #{tpu_custom_call.1} parent=1 // pred_check
      _
    $region11: #{tpu_custom_call.1} parent=1 // pred_check_branch
      %24 = sbr.rel (0) target = $region13
    $region12: #{tpu_custom_call.1} parent=1 // pred_region
      %25 = dma.done [#allocation3], 4096
    $region13: #{tpu_custom_call.1} parent=1 // pred_fallthru
      _
    %v26 = vlaneseq
    %v27 = vand.u32 %v26, 127
    %v28 = vadd.s32 %v27, 128
    %v29 = vld [vmem:[%s0] sm:$0xff]
    %30 = vset.pattern.permute.xlu0 0
    %31 = vperm.xlu0 %30, %v29
    %v32 = vpop.permute.xlu0 %31
    %vm33 = vcmp.eq.s32.totalorder %v32, %v27
    %vm34 = vcmp.eq.s32.totalorder %v32, %v28
    %v35 = vsel %vm33, 1, 0
    %v36 = vsel %vm34, 1, 0
    %v37 = vcvt.s32.f32 %v35
    %v38 = vcvt.s32.f32 %v36
    %v39 = vld [vmem:[#allocation2] sm:$0xff]
    %v40 = vld [vmem:[#allocation2 + $0x8] sm:$0xff]
    %v41 = vld [vmem:[#allocation2 + $0x10] sm:$0xff]
    %v42 = vld [vmem:[#allocation2 + $0x18] sm:$0xff]
    %v43 = vld [vmem:[#allocation2 + $0x20] sm:$0xff]
    %v44 = vld [vmem:[#allocation2 + $0x28] sm:$0xff]
    %v45 = vld [vmem:[#allocation2 + $0x30] sm:$0xff]
    %v46 = vld [vmem:[#allocation2 + $0x38] sm:$0xff]
    %v47 = vld [vmem:[#allocation2 + $0x40] sm:$0xff]
    %v48 = vld [vmem:[#allocation2 + $0x48] sm:$0xff]
    %v49 = vld [vmem:[#allocation2 + $0x50] sm:$0xff]
    %v50 = vld [vmem:[#allocation2 + $0x58] sm:$0xff]
    %v51 = vld [vmem:[#allocation2 + $0x60] sm:$0xff]
    %v52 = vld [vmem:[#allocation2 + $0x68] sm:$0xff]
    %v53 = vld [vmem:[#allocation2 + $0x70] sm:$0xff]
    %v54 = vld [vmem:[#allocation2 + $0x78] sm:$0xff]
    %v55 = vld [vmem:[#allocation2 + $0x80] sm:$0xff]
    %v56 = vld [vmem:[#allocation2 + $0x88] sm:$0xff]
    %v57 = vld [vmem:[#allocation2 + $0x90] sm:$0xff]
    %v58 = vld [vmem:[#allocation2 + $0x98] sm:$0xff]
    %v59 = vld [vmem:[#allocation2 + $0xa0] sm:$0xff]
    %v60 = vld [vmem:[#allocation2 + $0xa8] sm:$0xff]
    %v61 = vld [vmem:[#allocation2 + $0xb0] sm:$0xff]
    %v62 = vld [vmem:[#allocation2 + $0xb8] sm:$0xff]
    %v63 = vld [vmem:[#allocation2 + $0xc0] sm:$0xff]
    %v64 = vld [vmem:[#allocation2 + $0xc8] sm:$0xff]
    %v65 = vld [vmem:[#allocation2 + $0xd0] sm:$0xff]
    %v66 = vld [vmem:[#allocation2 + $0xd8] sm:$0xff]
    %v67 = vld [vmem:[#allocation2 + $0xe0] sm:$0xff]
    %v68 = vld [vmem:[#allocation2 + $0xe8] sm:$0xff]
    %v69 = vld [vmem:[#allocation2 + $0xf0] sm:$0xff]
    %v70 = vld [vmem:[#allocation2 + $0xf8] sm:$0xff]
    %71 = vmatprep.subr.mxu0 0.0
    %72 = vmatpush1.msra.mxu0 %v39
    %73 = vmatprep.subr.mxu0 0.0
    %74 = vmatpush1.msra.mxu0 %v40
    %75 = vmatprep.subr.mxu0 0.0
    %76 = vmatpush1.msra.mxu0 %v41
    %77 = vmatprep.subr.mxu0 0.0
    %78 = vmatpush1.msra.mxu0 %v42
    %79 = vmatprep.subr.mxu0 0.0
    %80 = vmatpush1.msra.mxu0 %v43
    %81 = vmatprep.subr.mxu0 0.0
    %82 = vmatpush1.msra.mxu0 %v44
    %83 = vmatprep.subr.mxu0 0.0
    %84 = vmatpush1.msra.mxu0 %v45
    %85 = vmatprep.subr.mxu0 0.0
    %86 = vmatpush1.msra.mxu0 %v46
    %87 = vmatprep.subr.mxu0 0.0
    %88 = vmatpush1.msra.mxu0 %v47
    %89 = vmatprep.subr.mxu0 0.0
    %90 = vmatpush1.msra.mxu0 %v48
    %91 = vmatprep.subr.mxu0 0.0
    %92 = vmatpush1.msra.mxu0 %v49
    %93 = vmatprep.subr.mxu0 0.0
    %94 = vmatpush1.msra.mxu0 %v50
    %95 = vmatprep.subr.mxu0 0.0
    %96 = vmatpush1.msra.mxu0 %v51
    %97 = vmatprep.subr.mxu0 0.0
    %98 = vmatpush1.msra.mxu0 %v52
    %99 = vmatprep.subr.mxu0 0.0
    %100 = vmatpush1.msra.mxu0 %v53
    %101 = vmatprep.subr.mxu0 0.0
    %102 = vmatpush1.msra.mxu0 %v54
    %103 = vmatprep.subr.mxu0 0.0
    %104 = vmatpush1.msra.mxu0 %v55
    %105 = vmatprep.subr.mxu0 0.0
    %106 = vmatpush1.msra.mxu0 %v56
    %107 = vmatprep.subr.mxu0 0.0
    %108 = vmatpush1.msra.mxu0 %v57
    %109 = vmatprep.subr.mxu0 0.0
    %110 = vmatpush1.msra.mxu0 %v58
    %111 = vmatprep.subr.mxu0 0.0
    %112 = vmatpush1.msra.mxu0 %v59
    %113 = vmatprep.subr.mxu0 0.0
    %114 = vmatpush1.msra.mxu0 %v60
    %115 = vmatprep.subr.mxu0 0.0
    %116 = vmatpush1.msra.mxu0 %v61
    %117 = vmatprep.subr.mxu0 0.0
    %118 = vmatpush1.msra.mxu0 %v62
    %119 = vmatprep.subr.mxu0 0.0
    %120 = vmatpush1.msra.mxu0 %v63
    %121 = vmatprep.subr.mxu0 0.0
    %122 = vmatpush1.msra.mxu0 %v64
    %123 = vmatprep.subr.mxu0 0.0
    %124 = vmatpush1.msra.mxu0 %v65
    %125 = vmatprep.subr.mxu0 0.0
    %126 = vmatpush1.msra.mxu0 %v66
    %127 = vmatprep.subr.mxu0 0.0
    %128 = vmatpush1.msra.mxu0 %v67
    %129 = vmatprep.subr.mxu0 0.0
    %130 = vmatpush1.msra.mxu0 %v68
    %131 = vmatprep.subr.mxu0 0.0
    %132 = vmatpush1.msra.mxu0 %v69
    %133 = vmatprep.subr.mxu0 0.0
    %134 = vmatpush1.msra.mxu0 %v70
    %135 = vmatprep.mubr.f32.mxu0 %v38
    %136 = vmatmul.mubr.f32.gmra.mrb[0].mxu0 %v37
    %v137 = vpop.f32.mrb[0].mxu0
    %v138 = vadd.f32 0.0, %v137
    %v139 = vpop.f32.mrb[0].mxu0
    %140 = vdwg.mxu0
    %141 = vst [vmem:[#allocation5] sm:$0xff] %v138
    // Predicated region
    $region14: #{tpu_custom_call.1} parent=1 // pred_check
      _
    $region15: #{tpu_custom_call.1} parent=1 // pred_check_branch
      %143 = sbr.rel (0) target = $region17
    $region16: #{tpu_custom_call.1} parent=1 // pred_region
      %s145 = ssub.s32 128, 128
      %146 = vsyncadd [#allocation4], %s145
      %s148 = sshll.u32 [#allocation5], 4
      %s149 = int_to_ptr.vmem [resolvable:$true] %s148
      %151 = dma.vmem_to_hbm [thread:$0]  %s149, 128, %s2, [#allocation4]
    $region17: #{tpu_custom_call.1} parent=1 // pred_fallthru
      _
    // Predicated region
    $region18: #{tpu_custom_call.1} parent=1 // pred_check
      _
    $region19: #{tpu_custom_call.1} parent=1 // pred_check_branch
      %153 = sbr.rel (0) target = $region21
    $region20: #{tpu_custom_call.1} parent=1 // pred_region
      %154 = dma.done [#allocation4], 128
    $region21: #{tpu_custom_call.1} parent=1 // pred_fallthru
      _
    %155 = vsyncpa [#allocation3], 1
    %156 = vsyncpa [#allocation4], 1

</llo_original>
